<compile_context>
chip_gen: v7x
topology: tpu7x:2x2x1
jax: 0.10.0
libtpu: 0.0.40
codegen_flags: <defaults>
</compile_context>

<pallas_src>
import functools

import jax
import jax.numpy as jnp
from jax.experimental import pallas as pl
from jax.experimental.pallas import tpu as pltpu


_LANE = 512  # lane width of the flattened slabs (multiple of 128)


# ---------------------------------------------------------------------------
# Pallas kernel: accumulate sum over a tile of  w * f(p2 - p1),  f = abs | sq.
# ---------------------------------------------------------------------------
def _wdist_kernel(p1_ref, p2_ref, w_ref, acc_ref, *, norm, block_rows):
    i = pl.program_id(1)  # reduction ("arbitrary") axis

    @pl.when(i == 0)
    def _():
        acc_ref[...] = jnp.zeros_like(acc_ref)

    d = p2_ref[...].astype(jnp.float32) - p1_ref[...].astype(jnp.float32)
    f = jnp.abs(d) if norm == 1 else d * d
    t = f * w_ref[...].astype(jnp.float32)            # (block_rows, _LANE)

    # Fold sublane groups with plain VPU adds into the resident (8, _LANE)
    # accumulator; the expensive cross-lane reduction happens exactly once,
    # outside the kernel.
    s = t[0:8, :]
    for g in range(1, block_rows // 8):
        s = s + t[8 * g:8 * (g + 1), :]
    acc_ref[...] += s


# ---------------------------------------------------------------------------
# Pallas-backed core: weight * mean(w1 * norm_fnc(scale_fac*(p2-p1)[/denom]).sum(-1))
# ---------------------------------------------------------------------------
def flow_warp_wdist_loss(p1, p2, w1, *, weight, scale_fac, norm=1, denom=None,
                         block_rows=None, num_partials=None):
    """p1, p2: (N, M, H, W, C); w1: (N, M, H, W); denom (optional): (N, M) > 0."""
    N, M, H, W, C = p1.shape
    assert p2.shape == p1.shape and w1.shape == (N, M, H, W)
    count = N * M * H * W
    p_pow = 1 if norm == 1 else 2

    # Fold per-(n, m) scalars into the weights / final scale.  norm_fnc is abs
    # or square and scale_fac, (s1+s2+eps) are > 0, so they commute with it.
    if denom is None:
        w = w1
        final_scale = float(weight) * (float(scale_fac) ** p_pow) / float(count)
    else:
        factor = jnp.asarray(scale_fac, jnp.float32) / denom.astype(jnp.float32)
        if p_pow == 2:
            factor = factor * factor
        w = w1.astype(jnp.float32) * factor[:, :, None, None]
        final_scale = float(weight) / float(count)

    # Expand the per-pixel weight across the C coordinate channels and flatten
    # everything into lane-dense (rows, _LANE) slabs.
    w_exp = jnp.broadcast_to(w[..., None], (N, M, H, W, C))
    total = count * C
    rows = -(-total // _LANE)

    if num_partials is None:
        num_partials = 2 if rows >= 16 else 1
    if block_rows is None:
        block_rows = 8 * max(1, min(32, -(-rows // (8 * num_partials))))
    block_rows = -(-block_rows // 8) * 8

    rows_p = -(-rows // (block_rows * num_partials)) * (block_rows * num_partials)
    pad = rows_p * _LANE - total

    def _flatten(x):
        xf = x.reshape(-1)
        if pad:
            xf = jnp.pad(xf, (0, pad))        # zero weights -> no contribution
        return xf.reshape(rows_p, _LANE)

    p1f, p2f, wf = _flatten(p1), _flatten(p2), _flatten(w_exp)

    inner = rows_p // (block_rows * num_partials)
    in_spec = pl.BlockSpec((block_rows, _LANE), lambda p, i: (p * inner + i, 0))
    out_spec = pl.BlockSpec((None, 8, _LANE), lambda p, i: (p, 0, 0))

    kernel = functools.partial(_wdist_kernel, norm=norm, block_rows=block_rows)
    partials = pl.pallas_call(
        kernel,
        out_shape=jax.ShapeDtypeStruct((num_partials, 8, _LANE), jnp.float32),
        grid_spec=pltpu.PrefetchScalarGridSpec(
            num_scalar_prefetch=0,
            grid=(num_partials, inner),
            in_specs=[in_spec, in_spec, in_spec],
            out_specs=out_spec,
        ),
        compiler_params=pltpu.CompilerParams(
            dimension_semantics=("parallel", "arbitrary")),
    )(p1f, p2f, wf)

    return final_scale * jnp.sum(partials)


# ---------------------------------------------------------------------------
# JAX transcription of the slicing / pairing / flow-offset part of forward().
# ---------------------------------------------------------------------------
def _prepare_flow_warp_inputs(idx, ok, flow, masks, coords, view_grid, *, gap,
                              tforms_fn, fg_tforms_fn, unscaled=False,
                              get_scale_fn=None, fg_get_scale_fn=None,
                              detach_mask=True):
    del ok
    flow = jnp.transpose(flow, (0, 2, 3, 1))                  # (B, H, W, 2)
    B, M, _, H, W = masks.shape
    if detach_mask:
        masks = jax.lax.stop_gradient(masks)
    masks = masks.reshape(B, M, H, W)
    if gap > 0:
        W1, I1 = masks[:-gap], idx[:-gap]
        P1, G1, F12 = coords[:-gap], view_grid[:-gap], flow[:-gap]
        I2 = idx[gap:]
    else:
        W1, I1 = masks[-gap:], idx[-gap:]
        P1, G1, F12 = coords[-gap:], view_grid[-gap:], flow[-gap:]
        I2 = idx[:gap]
    # TODO(synk): the torch code filters pairs with `valid = V1 & V2` boolean
    # indexing (data-dependent shapes); here every pair is assumed valid.
    F12 = jnp.concatenate([F12, jnp.zeros_like(F12[..., -1:])], axis=-1)  # (N,H,W,3)
    G2 = G1 + F12[:, None]                                                # (N,M,H,W,3)
    P2_bg = tforms_fn(I2, G2[:, 1:2])
    P2_fg = fg_tforms_fn(I2, G2[:, 0:1])
    P2 = jnp.concatenate([P2_fg, P2_bg], axis=1)
    denom = None
    if unscaled:
        s1 = jnp.concatenate([fg_get_scale_fn(I1), get_scale_fn(I1)], axis=1)
        s2 = jnp.concatenate([fg_get_scale_fn(I2), get_scale_fn(I2)], axis=1)
        s1 = jnp.concatenate([s1[:, :-1], jnp.ones_like(s1[:, -1:])], axis=1)
        s2 = jnp.concatenate([s2[:, :-1], jnp.ones_like(s2[:, -1:])], axis=1)
        denom = s1 + s2 + 1e-5                                            # (N, M)
    return P1, P2, W1, denom


def flow_warp_loss_forward(idx, ok, flow, masks, coords, view_grid, *, weight,
                           gap, tforms_fn, fg_tforms_fn, norm=1, unscaled=False,
                           get_scale_fn=None, fg_get_scale_fn=None,
                           detach_mask=True, block_rows=None, num_partials=None):
    if weight <= 0 or idx.shape[0] < abs(gap):
        return None
    p1, p2, w1, denom = _prepare_flow_warp_inputs(
        idx, ok, flow, masks, coords, view_grid, gap=gap, tforms_fn=tforms_fn,
        fg_tforms_fn=fg_tforms_fn, unscaled=unscaled, get_scale_fn=get_scale_fn,
        fg_get_scale_fn=fg_get_scale_fn, detach_mask=detach_mask)
    H, W = masks.shape[-2:]
    scale_fac = (W + H) / 4
    return flow_warp_wdist_loss(p1, p2, w1, weight=weight, scale_fac=scale_fac,
                                norm=norm, denom=denom, block_rows=block_rows,
                                num_partials=num_partials)


# ---------------------------------------------------------------------------
# Pure-jnp reference of the wdists / mean core, for verification.
# ---------------------------------------------------------------------------
def _wdist_reference(p1, p2, w1, *, weight, scale_fac, norm=1, denom=None):
    d = scale_fac * (p2.astype(jnp.float32) - p1.astype(jnp.float32))
    if denom is not None:
        d = d / denom[:, :, None, None, None]
    f = jnp.abs(d) if norm == 1 else jnp.square(d)
    wdists = w1.astype(jnp.float32) * f.sum(-1)
    return weight * wdists.mean()


def make_affine_tform(scales, biases):
    """Mock stand-in for the external view->canonical transform modules
    (FlowWarpLoss.tforms / .fg_tforms): a per-frame similarity transform."""
    def tform_fn(i2, grid):                       # grid: (N, 1, H, W, 3)
        s = scales[i2][:, None, None, None, None]
        b = biases[i2][:, None, None, None, :]
        return s * grid + b
    def get_scale_fn(i1):                         # (N, 1), mirrors .get_scale
        return scales[i1][:, None]
    return tform_fn, get_scale_fn


if __name__ == "__main__":
    key = jax.random.PRNGKey(0)
    ks = jax.random.split(key, 16)

    # ---- case 1: positive gap, norm=1, scaled ------------------------------
    B, M, H, W, C = 17, 2, 16, 16, 3
    gap, weight = 1, 0.7
    idx = jnp.arange(B, dtype=jnp.int32)
    ok = jnp.ones((B,), dtype=bool)
    flow = 0.05 * jax.random.normal(ks[0], (B, 2, H, W), dtype=jnp.float32)
    masks = jax.nn.sigmoid(jax.random.normal(ks[1], (B, M, 1, H, W), dtype=jnp.float32))
    coords = jax.random.normal(ks[2], (B, M, H, W, C), dtype=jnp.float32)
    view_grid = jax.random.normal(ks[3], (B, M, H, W, C), dtype=jnp.float32)
    tforms_fn, get_scale_fn = make_affine_tform(
        0.8 + 0.4 * jax.random.uniform(ks[4], (B,), dtype=jnp.float32),
        0.1 * jax.random.normal(ks[5], (B, C), dtype=jnp.float32))
    fg_tforms_fn, fg_get_scale_fn = make_affine_tform(
        0.8 + 0.4 * jax.random.uniform(ks[6], (B,), dtype=jnp.float32),
        0.1 * jax.random.normal(ks[7], (B, C), dtype=jnp.float32))

    # block_rows=8 keeps several grid steps alive at these tiny demo shapes so
    # the accumulator / parallel-partials paths are exercised.
    loss = flow_warp_loss_forward(idx, ok, flow, masks, coords, view_grid,
                                  weight=weight, gap=gap, tforms_fn=tforms_fn,
                                  fg_tforms_fn=fg_tforms_fn, norm=1,
                                  block_rows=8)
    loss = jax.block_until_ready(loss)
    p1, p2, w1, _ = _prepare_flow_warp_inputs(
        idx, ok, flow, masks, coords, view_grid, gap=gap, tforms_fn=tforms_fn,
        fg_tforms_fn=fg_tforms_fn)
    ref = _wdist_reference(p1, p2, w1, weight=weight, scale_fac=(W + H) / 4, norm=1)
    assert jnp.allclose(loss, ref, rtol=1e-4, atol=1e-6), (loss, ref)

    # auto block sizing path (bigger tiles)
    loss_auto = flow_warp_wdist_loss(p1, p2, w1, weight=weight,
                                     scale_fac=(W + H) / 4, norm=1)
    loss_auto = jax.block_until_ready(loss_auto)
    assert jnp.allclose(loss_auto, ref, rtol=1e-4, atol=1e-6), (loss_auto, ref)

    # ---- case 2: negative gap, norm=2, unscaled, awkward shapes (padding) ---
    B2, M2, H2, W2 = 9, 2, 12, 20
    gap2, weight2 = -2, 1.3
    idx2 = jnp.arange(B2, dtype=jnp.int32)
    ok2 = jnp.ones((B2,), dtype=bool)
    flow2 = 0.05 * jax.random.normal(ks[8], (B2, 2, H2, W2), dtype=jnp.float32)
    masks2 = jax.nn.sigmoid(jax.random.normal(ks[9], (B2, M2, 1, H2, W2), dtype=jnp.float32))
    coords2 = jax.random.normal(ks[10], (B2, M2, H2, W2, C), dtype=jnp.float32)
    view_grid2 = jax.random.normal(ks[11], (B2, M2, H2, W2, C), dtype=jnp.float32)
    tforms_fn2, get_scale_fn2 = make_affine_tform(
        0.8 + 0.4 * jax.random.uniform(ks[12], (B2,), dtype=jnp.float32),
        0.1 * jax.random.normal(ks[13], (B2, C), dtype=jnp.float32))
    fg_tforms_fn2, fg_get_scale_fn2 = make_affine_tform(
        0.8 + 0.4 * jax.random.uniform(ks[14], (B2,), dtype=jnp.float32),
        0.1 * jax.random.normal(ks[15], (B2, C), dtype=jnp.float32))

    loss2 = flow_warp_loss_forward(idx2, ok2, flow2, masks2, coords2, view_grid2,
                                   weight=weight2, gap=gap2, tforms_fn=tforms_fn2,
                                   fg_tforms_fn=fg_tforms_fn2, norm=2,
                                   unscaled=True, get_scale_fn=get_scale_fn2,
                                   fg_get_scale_fn=fg_get_scale_fn2, block_rows=8)
    loss2 = jax.block_until_ready(loss2)
    p1b, p2b, w1b, denomb = _prepare_flow_warp_inputs(
        idx2, ok2, flow2, masks2, coords2, view_grid2, gap=gap2,
        tforms_fn=tforms_fn2, fg_tforms_fn=fg_tforms_fn2, unscaled=True,
        get_scale_fn=get_scale_fn2, fg_get_scale_fn=fg_get_scale_fn2)
    ref2 = _wdist_reference(p1b, p2b, w1b, weight=weight2,
                            scale_fac=(W2 + H2) / 4, norm=2, denom=denomb)
    assert jnp.allclose(loss2, ref2, rtol=1e-4, atol=1e-6), (loss2, ref2)

    print("KERNEL_OK")
</pallas_src>

<mosaic_0001>
module attributes {stable_mosaic.version = 11 : i64} {
  func.func @_wdist_kernel(%arg0: i32, %arg1: i32, %arg2: memref<8x512xf32, #tpu.memory_space<vmem>>, %arg3: memref<8x512xf32, #tpu.memory_space<vmem>>, %arg4: memref<8x512xf32, #tpu.memory_space<vmem>>, %arg5: memref<1x8x512xf32, #tpu.memory_space<vmem>>) attributes {dimension_semantics = [#tpu.dimension_semantics<parallel>, #tpu.dimension_semantics<arbitrary>], iteration_bounds = array<i64: 2, 3>, scalar_prefetch = 0 : i64, scratch_operands = 0 : i64, tpu.core_type = #tpu.core_type<tc>, window_params = [{transform_indices = @transform_0, window_bounds = array<i64: 8, 512>}, {transform_indices = @transform_1, window_bounds = array<i64: 8, 512>}, {transform_indices = @transform_2, window_bounds = array<i64: 8, 512>}, {transform_indices = @transform_3, window_bounds = array<i64: 1, 8, 512>}]} {
    %c0_i32 = arith.constant 0 : i32
    %0 = arith.cmpi eq, %arg1, %c0_i32 : i32
    %1 = arith.extui %0 : i1 to i32
    %c0_i32_0 = arith.constant 0 : i32
    %2 = arith.cmpi ne, %1, %c0_i32_0 : i32
    scf.if %2 {
      %cst = arith.constant 0.000000e+00 : f32
      %15 = vector.broadcast %cst : f32 to vector<8x512xf32>
      %c0_12 = arith.constant 0 : index
      %c0_13 = arith.constant 0 : index
      %c0_14 = arith.constant 0 : index
      %16 = vector.load %arg5[%c0_12, %c0_13, %c0_14] : memref<1x8x512xf32, #tpu.memory_space<vmem>>, vector<1x8x512xf32>
      %17 = vector.shape_cast %16 : vector<1x8x512xf32> to vector<8x512xf32>
      %18 = vector.shape_cast %15 : vector<8x512xf32> to vector<1x8x512xf32>
      tpu.vector_store %arg5[%c0_12, %c0_13, %c0_14], %18 {strides = array<i32>} : memref<1x8x512xf32, #tpu.memory_space<vmem>>, vector<1x8x512xf32>,
    } else {
    }
    %c0 = arith.constant 0 : index
    %c0_1 = arith.constant 0 : index
    %3 = vector.load %arg3[%c0, %c0_1] : memref<8x512xf32, #tpu.memory_space<vmem>>, vector<8x512xf32>
    %c0_2 = arith.constant 0 : index
    %c0_3 = arith.constant 0 : index
    %4 = vector.load %arg2[%c0_2, %c0_3] : memref<8x512xf32, #tpu.memory_space<vmem>>, vector<8x512xf32>
    %5 = arith.subf %3, %4 : vector<8x512xf32>
    %6 = math.absf %5 : vector<8x512xf32>
    %c0_4 = arith.constant 0 : index
    %c0_5 = arith.constant 0 : index
    %7 = vector.load %arg4[%c0_4, %c0_5] : memref<8x512xf32, #tpu.memory_space<vmem>>, vector<8x512xf32>
    %8 = arith.mulf %6, %7 : vector<8x512xf32>
    %c0_6 = arith.constant 0 : index
    %c0_7 = arith.constant 0 : index
    %c0_8 = arith.constant 0 : index
    %9 = vector.load %arg5[%c0_6, %c0_7, %c0_8] : memref<1x8x512xf32, #tpu.memory_space<vmem>>, vector<1x8x512xf32>
    %10 = vector.shape_cast %9 : vector<1x8x512xf32> to vector<8x512xf32>
    %11 = arith.addf %10, %8 : vector<8x512xf32>
    %c0_9 = arith.constant 0 : index
    %c0_10 = arith.constant 0 : index
    %c0_11 = arith.constant 0 : index
    %12 = vector.load %arg5[%c0_9, %c0_10, %c0_11] : memref<1x8x512xf32, #tpu.memory_space<vmem>>, vector<1x8x512xf32>
    %13 = vector.shape_cast %12 : vector<1x8x512xf32> to vector<8x512xf32>
    %14 = vector.shape_cast %11 : vector<8x512xf32> to vector<1x8x512xf32>
    tpu.vector_store %arg5[%c0_9, %c0_10, %c0_11], %14 {strides = array<i32>} : memref<1x8x512xf32, #tpu.memory_space<vmem>>, vector<1x8x512xf32>,
    return
  }
  func.func @transform_0(%arg0: i32, %arg1: i32) -> (i32, i32) {
    %c3_i32 = arith.constant 3 : i32
    %0 = arith.muli %arg0, %c3_i32 : i32
    %1 = arith.addi %0, %arg1 : i32
    %c0_i32 = arith.constant 0 : i32
    %c0_i32_0 = arith.constant 0 : i32
    return %1, %c0_i32 : i32, i32
  }
  func.func @transform_1(%arg0: i32, %arg1: i32) -> (i32, i32) {
    %c3_i32 = arith.constant 3 : i32
    %0 = arith.muli %arg0, %c3_i32 : i32
    %1 = arith.addi %0, %arg1 : i32
    %c0_i32 = arith.constant 0 : i32
    %c0_i32_0 = arith.constant 0 : i32
    return %1, %c0_i32 : i32, i32
  }
  func.func @transform_2(%arg0: i32, %arg1: i32) -> (i32, i32) {
    %c3_i32 = arith.constant 3 : i32
    %0 = arith.muli %arg0, %c3_i32 : i32
    %1 = arith.addi %0, %arg1 : i32
    %c0_i32 = arith.constant 0 : i32
    %c0_i32_0 = arith.constant 0 : i32
    return %1, %c0_i32 : i32, i32
  }
  func.func @transform_3(%arg0: i32, %arg1: i32) -> (i32, i32, i32) {
    %c0_i32 = arith.constant 0 : i32
    %c0_i32_0 = arith.constant 0 : i32
    %c0_i32_1 = arith.constant 0 : i32
    return %arg0, %c0_i32, %c0_i32_0 : i32, i32, i32
  }
}

</mosaic_0001>

<llo_original>
// kernel: tpu_custom_call.1
$region0: #{tpu_custom_call.1}
  #allocation0 [shape = 'u32[]', space=smem, size = 0x4, offset = 0x4, fixed_abs, tag = 'smem constant byte address 0x4 - core index']
  #allocation1 [shape = 'u32[144,128]{1,0:T(1,128)}', space=vmem, size = 0x12000, scoped, tag = 'internal scratch']
  %s0 = inlined_call_operand.hbm [shape: f32[48,512], index: 0, kind: input, shape index: {}]
  %s1 = inlined_call_operand.hbm [shape: f32[48,512], index: 1, kind: input, shape index: {}]
  %s2 = inlined_call_operand.hbm [shape: f32[48,512], index: 2, kind: input, shape index: {}]
  %s3 = inlined_call_operand.hbm [shape: f32[2,8,512], index: 3, kind: output, shape index: {}]
  %s4 = sld [smem:[#allocation0]]
  $region61: #{tpu_custom_call.1} parent=0
    _
  %s6 = ssub.s32 1, %s4
  %s7 = scalar_select 0, %s6, %s4
  $region1: #{tpu_custom_call.1} parent=0
    #allocation2 [shape = 'u8[32768]{0}', space=vmem, size = 0x8000, scoped, tag = 'input window, operand 0']
    #allocation3 [shape = 's32[2]{0}', space=sflag, size = 0x8, scoped, tag = 'scoped memory for tpu_custom_call.1']
    #allocation4 [shape = 's32[2]{0}', space=sflag, size = 0x8, scoped, tag = 'scoped memory for tpu_custom_call.1']
    #allocation5 [shape = 'u8[32768]{0}', space=vmem, size = 0x8000, scoped, tag = 'input window, operand 1']
    #allocation6 [shape = 's32[2]{0}', space=sflag, size = 0x8, scoped, tag = 'scoped memory for tpu_custom_call.1']
    #allocation7 [shape = 'u8[32768]{0}', space=vmem, size = 0x8000, scoped, tag = 'input window, operand 2']
    #allocation8 [shape = 'u8[32768]{0}', space=vmem, size = 0x8000, scoped, tag = 'output window, operand 0']
    %8 = vsyncpa [#allocation3], 0
    %s9 = scalar_lea.sflag [#allocation3], 1
    %10 = vsyncpa %s9, 0
    %11 = vsyncpa [#allocation6], 0
    %s12 = scalar_lea.sflag [#allocation6], 1
    %13 = vsyncpa %s12, 0
    %14 = vsyncpa [#allocation4], 0
    %s15 = scalar_lea.sflag [#allocation4], 1
    %16 = vsyncpa %s15, 0
    loop: start=0, step=1, limit=8
    $region2: #{tpu_custom_call.1} parent=1 // loop_pre_header
      _
    $region3: #{tpu_custom_call.1} parent=1 // loop_header
      %s18 = sphi 0, %s22
      %p19 = scmp.ge.s32.totalorder %s18, 8
      %s25 = sphi 0, %s37
      %s26 = sphi 0, %s33
      %s27 = sphi 0, %s25
      %s28 = sphi 0, %s26
      %s29 = sphi 0, %s27
      %s30 = sphi 0, %s28
      %s44 = sphi 0, %s46
      %s47 = sphi 0, %s44
      %s48 = sphi 0, %s47
      %s64 = sphi 0, %s48
      %s74 = sphi 0, %s76
      %s77 = sphi 0, %s74
      %s78 = sphi 0, %s77
      %s94 = sphi 0, %s78
      %s104 = sphi 0, %s106
      %s107 = sphi 0, %s104
      %s108 = sphi 0, %s107
      %s124 = sphi 0, %s108
      %s130 = sphi 0, %s132
      %s133 = sphi 0, %s130
      %s134 = sphi 0, %s133
      %s150 = sphi 0, %s134
    $region4: #{tpu_custom_call.1} parent=1 // loop_header_branch
      %21 = sbr.rel (%p19) target = $region8
    $region5: #{tpu_custom_call.1} parent=1 // loop_body
      %s23 = ssub.s32 %s18, 1
      %s24 = ssub.s32 %s18, 2
      %s31 = sadd.s32 1, %s26
      %p32 = scmp.ge.s32.totalorder %s31, 3
      %s33 = scalar_select %p32, 0, %s31
      %s34 = sadd.s32 1, %s25
      %s35 = scalar_select %p32, %s34, %s25
      %p36 = scmp.ge.s32.totalorder %s35, 2
      %s37 = scalar_select %p36, 0, %s35
      %s38 = smul.u32 %s25, 3
      %s39 = sadd.s32 %s38, %s26
      %s40 = smul.u32 %s37, 3
      %s41 = sadd.s32 %s40, %s33
      %s42 = ssub.s32 %s39, %s41
      %p43 = scmp.eq.s32.totalorder %s42, 0
      %s45 = sadd.s32 %s44, 1
      %s46 = scalar_select %p43, %s44, %s45
      %p49 = pneg %p43
      %p50 = scmp.eq.s32.totalorder %s18, 5
      %p51 = por %p49, %p50
      %p52 = scmp.ne.s32.totalorder %s44, %s47
      %p53 = scmp.eq.s32.totalorder %s18, 0
      %p54 = por %p52, %p53
      %p55 = scmp.ne.s32.totalorder %s44, %s47
      %p56 = scmp.eq.s32.totalorder %s23, 5
      %p57 = por %p55, %p56
      %p58 = scmp.ne.s32.totalorder %s47, %s48
      %p59 = scmp.eq.s32.totalorder %s23, 0
      %p60 = por %p58, %p59
      %p61 = scmp.ne.s32.totalorder %s47, %s48
      %p62 = scmp.eq.s32.totalorder %s24, 5
      %p63 = por %p61, %p62
      %p65 = scmp.ne.s32.totalorder %s48, %s64
      %p66 = scmp.eq.s32.totalorder %s24, 0
      %p67 = por %p65, %p66
      %s68 = smul.u32 %s25, 3
      %s69 = sadd.s32 %s68, %s26
      %s70 = smul.u32 %s37, 3
      %s71 = sadd.s32 %s70, %s33
      %s72 = ssub.s32 %s69, %s71
      %p73 = scmp.eq.s32.totalorder %s72, 0
      %s75 = sadd.s32 %s74, 1
      %s76 = scalar_select %p73, %s74, %s75
      %p79 = pneg %p73
      %p80 = scmp.eq.s32.totalorder %s18, 5
      %p81 = por %p79, %p80
      %p82 = scmp.ne.s32.totalorder %s74, %s77
      %p83 = scmp.eq.s32.totalorder %s18, 0
      %p84 = por %p82, %p83
      %p85 = scmp.ne.s32.totalorder %s74, %s77
      %p86 = scmp.eq.s32.totalorder %s23, 5
      %p87 = por %p85, %p86
      %p88 = scmp.ne.s32.totalorder %s77, %s78
      %p89 = scmp.eq.s32.totalorder %s23, 0
      %p90 = por %p88, %p89
      %p91 = scmp.ne.s32.totalorder %s77, %s78
      %p92 = scmp.eq.s32.totalorder %s24, 5
      %p93 = por %p91, %p92
      %p95 = scmp.ne.s32.totalorder %s78, %s94
      %p96 = scmp.eq.s32.totalorder %s24, 0
      %p97 = por %p95, %p96
      %s98 = smul.u32 %s25, 3
      %s99 = sadd.s32 %s98, %s26
      %s100 = smul.u32 %s37, 3
      %s101 = sadd.s32 %s100, %s33
      %s102 = ssub.s32 %s99, %s101
      %p103 = scmp.eq.s32.totalorder %s102, 0
      %s105 = sadd.s32 %s104, 1
      %s106 = scalar_select %p103, %s104, %s105
      %p109 = pneg %p103
      %p110 = scmp.eq.s32.totalorder %s18, 5
      %p111 = por %p109, %p110
      %p112 = scmp.ne.s32.totalorder %s104, %s107
      %p113 = scmp.eq.s32.totalorder %s18, 0
      %p114 = por %p112, %p113
      %p115 = scmp.ne.s32.totalorder %s104, %s107
      %p116 = scmp.eq.s32.totalorder %s23, 5
      %p117 = por %p115, %p116
      %p118 = scmp.ne.s32.totalorder %s107, %s108
      %p119 = scmp.eq.s32.totalorder %s23, 0
      %p120 = por %p118, %p119
      %p121 = scmp.ne.s32.totalorder %s107, %s108
      %p122 = scmp.eq.s32.totalorder %s24, 5
      %p123 = por %p121, %p122
      %p125 = scmp.ne.s32.totalorder %s108, %s124
      %p126 = scmp.eq.s32.totalorder %s24, 0
      %p127 = por %p125, %p126
      %s128 = ssub.s32 %s25, %s37
      %p129 = scmp.eq.s32.totalorder %s128, 0
      %s131 = sadd.s32 %s130, 1
      %s132 = scalar_select %p129, %s130, %s131
      %p135 = pneg %p129
      %p136 = scmp.eq.s32.totalorder %s18, 5
      %p137 = por %p135, %p136
      %p138 = scmp.ne.s32.totalorder %s130, %s133
      %p139 = scmp.eq.s32.totalorder %s18, 0
      %p140 = por %p138, %p139
      %p141 = scmp.ne.s32.totalorder %s130, %s133
      %p142 = scmp.eq.s32.totalorder %s23, 5
      %p143 = por %p141, %p142
      %p144 = scmp.ne.s32.totalorder %s133, %s134
      %p145 = scmp.eq.s32.totalorder %s23, 0
      %p146 = por %p144, %p145
      %p147 = scmp.ne.s32.totalorder %s133, %s134
      %p148 = scmp.eq.s32.totalorder %s24, 5
      %p149 = por %p147, %p148
      %p151 = scmp.ne.s32.totalorder %s134, %s150
      %p152 = scmp.eq.s32.totalorder %s24, 0
      %p153 = por %p151, %p152
      %p154 = scmp.le.s32.totalorder 1, %s18
      %p155 = scmp.lt.s32.totalorder %s18, 7
      %p156 = pnand %p154, %p155
      %p157 = pneg %p156
      // Predicated region
      $region9: #{tpu_custom_call.1} parent=5 // pred_check
        _
      $region10: #{tpu_custom_call.1} parent=5 // pred_check_branch
        %159 = sbr.rel (%p156) target = $region12
      $region11: #{tpu_custom_call.1} parent=5 // pred_region
        %s160 = ssub.s32 %s18, 1
      $region12: #{tpu_custom_call.1} parent=5 // pred_fallthru
        _
      %p161 = scmp.lt.s32.totalorder %s18, 6
      // Predicated region
      $region13: #{tpu_custom_call.1} parent=5 // pred_check
        %p162 = pneg %p161
      $region14: #{tpu_custom_call.1} parent=5 // pred_check_branch
        %164 = sbr.rel (%p162) target = $region16
      $region15: #{tpu_custom_call.1} parent=5 // pred_region
        // Predicated region
        $region17: #{tpu_custom_call.1} parent=15 // pred_check
          %p165 = pneg %p54
        $region18: #{tpu_custom_call.1} parent=15 // pred_check_branch
          %167 = sbr.rel (%p165) target = $region20
        $region19: #{tpu_custom_call.1} parent=15 // pred_region
          %s168 = sand.u32 %s44, 1
          %s169 = scalar_lea.sflag [#allocation3], %s168
          %s170 = sand.u32 %s44, 1
          %s171 = smul.addr %s170, 32
          %s172 = scalar_lea.vmem [#allocation2], %s171
          %s173 = smul.u32 %s25, 3
          %s174 = sadd.s32 %s173, %s26
          %s176 = ssub.s32 512, 512
          %177 = vsyncadd %s169, %s176
          %s178 = smul.addr %s174, 4
          %s179 = smul.addr %s178, 128
          %s180 = scalar_lea.hbm %s0, %s179
          %s182 = sshll.u32 %s172, 4
          %s183 = int_to_ptr.vmem [resolvable:$true] %s182
          %185 = dma.hbm_to_vmem [thread:$0]  %s180, 512, %s183, %s169
        $region20: #{tpu_custom_call.1} parent=15 // pred_fallthru
          _
        // Predicated region
        $region21: #{tpu_custom_call.1} parent=15 // pred_check
          %p186 = pneg %p84
        $region22: #{tpu_custom_call.1} parent=15 // pred_check_branch
          %188 = sbr.rel (%p186) target = $region24
        $region23: #{tpu_custom_call.1} parent=15 // pred_region
          %s189 = sand.u32 %s18, 1
          %s190 = scalar_lea.sflag [#allocation6], %s189
          %s191 = sand.u32 %s74, 1
          %s192 = smul.addr %s191, 32
          %s193 = scalar_lea.vmem [#allocation5], %s192
          %s194 = smul.u32 %s25, 3
          %s195 = sadd.s32 %s194, %s26
          %s197 = ssub.s32 512, 512
          %198 = vsyncadd %s190, %s197
          %s199 = smul.addr %s195, 4
          %s200 = smul.addr %s199, 128
          %s201 = scalar_lea.hbm %s1, %s200
          %s203 = sshll.u32 %s193, 4
          %s204 = int_to_ptr.vmem [resolvable:$true] %s203
          %206 = dma.hbm_to_vmem [thread:$0]  %s201, 512, %s204, %s190
        $region24: #{tpu_custom_call.1} parent=15 // pred_fallthru
          _
        // Predicated region
        $region25: #{tpu_custom_call.1} parent=15 // pred_check
          %p207 = pneg %p114
        $region26: #{tpu_custom_call.1} parent=15 // pred_check_branch
          %209 = sbr.rel (%p207) target = $region28
        $region27: #{tpu_custom_call.1} parent=15 // pred_region
          %s210 = sand.u32 %s18, 1
          %s211 = scalar_lea.sflag [#allocation6], %s210
          %s212 = sand.u32 %s104, 1
          %s213 = smul.addr %s212, 32
          %s214 = scalar_lea.vmem [#allocation7], %s213
          %s215 = smul.u32 %s25, 3
          %s216 = sadd.s32 %s215, %s26
          %s218 = ssub.s32 512, 512
          %219 = vsyncadd %s211, %s218
          %s220 = smul.addr %s216, 4
          %s221 = smul.addr %s220, 128
          %s222 = scalar_lea.hbm %s2, %s221
          %s224 = sshll.u32 %s214, 4
          %s225 = int_to_ptr.vmem [resolvable:$true] %s224
          %227 = dma.hbm_to_vmem [thread:$0]  %s222, 512, %s225, %s211
        $region28: #{tpu_custom_call.1} parent=15 // pred_fallthru
          _
      $region16: #{tpu_custom_call.1} parent=5 // pred_fallthru
        _
      %p228 = scmp.le.s32.totalorder 1, %s18
      %p229 = scmp.lt.s32.totalorder %s18, 7
      %p230 = pnand %p228, %p229
      %p231 = pneg %p230
      // Predicated region
      $region29: #{tpu_custom_call.1} parent=5 // pred_check
        _
      $region30: #{tpu_custom_call.1} parent=5 // pred_check_branch
        %233 = sbr.rel (%p230) target = $region32
      $region31: #{tpu_custom_call.1} parent=5 // pred_region
        %s234 = ssub.s32 %s18, 1
        %s235 = sand.u32 %s47, 1
        %s236 = scalar_lea.sflag [#allocation3], %s235
        %s237 = sand.u32 %s47, 1
        %s238 = smul.addr %s237, 32
        %s239 = scalar_lea.vmem [#allocation2], %s238
        // Predicated region
        $region33: #{tpu_custom_call.1} parent=31 // pred_check
          %p240 = pneg %p60
        $region34: #{tpu_custom_call.1} parent=31 // pred_check_branch
          %242 = sbr.rel (%p240) target = $region36
        $region35: #{tpu_custom_call.1} parent=31 // pred_region
          %243 = dma.done %s236, 512
        $region36: #{tpu_custom_call.1} parent=31 // pred_fallthru
          _
        %s244 = sand.u32 %s23, 1
        %s245 = scalar_lea.sflag [#allocation6], %s244
        %s246 = sand.u32 %s77, 1
        %s247 = smul.addr %s246, 32
        %s248 = scalar_lea.vmem [#allocation5], %s247
        // Predicated region
        $region37: #{tpu_custom_call.1} parent=31 // pred_check
          %p249 = pneg %p90
        $region38: #{tpu_custom_call.1} parent=31 // pred_check_branch
          %251 = sbr.rel (%p249) target = $region40
        $region39: #{tpu_custom_call.1} parent=31 // pred_region
          %252 = dma.done %s245, 512
        $region40: #{tpu_custom_call.1} parent=31 // pred_fallthru
          _
        %s253 = sand.u32 %s23, 1
        %s254 = scalar_lea.sflag [#allocation6], %s253
        %s255 = sand.u32 %s107, 1
        %s256 = smul.addr %s255, 32
        %s257 = scalar_lea.vmem [#allocation7], %s256
        // Predicated region
        $region41: #{tpu_custom_call.1} parent=31 // pred_check
          %p258 = pneg %p120
        $region42: #{tpu_custom_call.1} parent=31 // pred_check_branch
          %260 = sbr.rel (%p258) target = $region44
        $region43: #{tpu_custom_call.1} parent=31 // pred_region
          %261 = dma.done %s254, 512
        $region44: #{tpu_custom_call.1} parent=31 // pred_fallthru
          _
        %s262 = sand.u32 %s47, 1
        %s263 = scalar_lea.sflag [#allocation3], %s262
        %s264 = sand.u32 %s47, 1
        %s265 = smul.addr %s264, 32
        %s266 = scalar_lea.vmem [#allocation2], %s265
        %p267 = pneg %p60
        %p268 = pneg %p57
        %s269 = sand.u32 %s23, 1
        %s270 = scalar_lea.sflag [#allocation6], %s269
        %s271 = sand.u32 %s77, 1
        %s272 = smul.addr %s271, 32
        %s273 = scalar_lea.vmem [#allocation5], %s272
        %p274 = pneg %p90
        %p275 = pneg %p87
        %s276 = sand.u32 %s23, 1
        %s277 = scalar_lea.sflag [#allocation6], %s276
        %s278 = sand.u32 %s107, 1
        %s279 = smul.addr %s278, 32
        %s280 = scalar_lea.vmem [#allocation7], %s279
        %p281 = pneg %p120
        %p282 = pneg %p117
        %p283 = pneg %p146
        %p284 = pneg %p143
        %s285 = sand.u32 %s133, 1
        %s286 = scalar_lea.sflag [#allocation4], %s285
        %s287 = sand.u32 %s133, 1
        %s288 = smul.addr %s287, 32
        %s289 = scalar_lea.vmem [#allocation8], %s288
        %s290 = smul.u32 %s27, 3
        %s291 = sadd.s32 %s290, %s28
        %s292 = smul.u32 %s27, 3
        %s293 = sadd.s32 %s292, %s28
        %s294 = smul.u32 %s27, 3
        %s295 = sadd.s32 %s294, %s28
        %p296 = scmp.eq.s32.totalorder %s28, 0
        // Predicated region
        $region45: #{tpu_custom_call.1} parent=31 // pred_check
          %p297 = pneg %p296
        $region46: #{tpu_custom_call.1} parent=31 // pred_check_branch
          %299 = sbr.rel (%p297) target = $region48
        $region47: #{tpu_custom_call.1} parent=31 // pred_region
          %300 = vst [vmem:[%s289] sm:$0xff] 0.0
          %301 = vst [vmem:[%s289 + $0x8] sm:$0xff] 0.0
          %302 = vst [vmem:[%s289 + $0x10] sm:$0xff] 0.0
          %303 = vst [vmem:[%s289 + $0x18] sm:$0xff] 0.0
        $region48: #{tpu_custom_call.1} parent=31 // pred_fallthru
          _
        %v304 = vld [vmem:[%s248] sm:$0xff]
        %v305 = vld [vmem:[%s248 + $0x8] sm:$0xff]
        %v306 = vld [vmem:[%s248 + $0x10] sm:$0xff]
        %v307 = vld [vmem:[%s248 + $0x18] sm:$0xff]
        %v308 = vld [vmem:[%s239] sm:$0xff]
        %v309 = vld [vmem:[%s239 + $0x8] sm:$0xff]
        %v310 = vld [vmem:[%s239 + $0x10] sm:$0xff]
        %v311 = vld [vmem:[%s239 + $0x18] sm:$0xff]
        %v312 = vsub.f32 %v304, %v308
        %v313 = vsub.f32 %v305, %v309
        %v314 = vsub.f32 %v306, %v310
        %v315 = vsub.f32 %v307, %v311
        %v316 = vand.u32 2147483647, %v312
        %v317 = vand.u32 2147483647, %v313
        %v318 = vand.u32 2147483647, %v314
        %v319 = vand.u32 2147483647, %v315
        %v320 = vld [vmem:[%s257] sm:$0xff]
        %v321 = vld [vmem:[%s257 + $0x8] sm:$0xff]
        %v322 = vld [vmem:[%s257 + $0x10] sm:$0xff]
        %v323 = vld [vmem:[%s257 + $0x18] sm:$0xff]
        %v324 = vmul.f32 %v316, %v320
        %v325 = vmul.f32 %v317, %v321
        %v326 = vmul.f32 %v318, %v322
        %v327 = vmul.f32 %v319, %v323
        %v328 = vld [vmem:[%s289] sm:$0xff]
        %v329 = vld [vmem:[%s289 + $0x8] sm:$0xff]
        %v330 = vld [vmem:[%s289 + $0x10] sm:$0xff]
        %v331 = vld [vmem:[%s289 + $0x18] sm:$0xff]
        %v332 = vadd.f32 %v328, %v324
        %v333 = vadd.f32 %v329, %v325
        %v334 = vadd.f32 %v330, %v326
        %v335 = vadd.f32 %v331, %v327
        %336 = vst [vmem:[%s289] sm:$0xff] %v332
        %337 = vst [vmem:[%s289 + $0x8] sm:$0xff] %v333
        %338 = vst [vmem:[%s289 + $0x10] sm:$0xff] %v334
        %339 = vst [vmem:[%s289 + $0x18] sm:$0xff] %v335
        %s340 = sand.u32 %s133, 1
        %s341 = scalar_lea.sflag [#allocation4], %s340
        %s342 = sand.u32 %s133, 1
        %s343 = smul.addr %s342, 32
        %s344 = scalar_lea.vmem [#allocation8], %s343
        // Predicated region
        $region49: #{tpu_custom_call.1} parent=31 // pred_check
          %p345 = pneg %p143
        $region50: #{tpu_custom_call.1} parent=31 // pred_check_branch
          %347 = sbr.rel (%p345) target = $region52
        $region51: #{tpu_custom_call.1} parent=31 // pred_region
          %s349 = ssub.s32 512, 512
          %350 = vsyncadd %s341, %s349
          %s351 = smul.addr %s27, 4
          %s352 = smul.addr %s351, 128
          %s353 = scalar_lea.hbm %s3, %s352
          %s355 = sshll.u32 %s344, 4
          %s356 = int_to_ptr.vmem [resolvable:$true] %s355
          %358 = dma.vmem_to_hbm [thread:$0]  %s356, 512, %s353, %s341
        $region52: #{tpu_custom_call.1} parent=31 // pred_fallthru
          _
      $region32: #{tpu_custom_call.1} parent=5 // pred_fallthru
        _
      %p359 = scmp.le.s32.totalorder 2, %s18
      // Predicated region
      $region53: #{tpu_custom_call.1} parent=5 // pred_check
        %p360 = pneg %p359
      $region54: #{tpu_custom_call.1} parent=5 // pred_check_branch
        %362 = sbr.rel (%p360) target = $region56
      $region55: #{tpu_custom_call.1} parent=5 // pred_region
        %s363 = ssub.s32 %s18, 2
        // Predicated region
        $region57: #{tpu_custom_call.1} parent=55 // pred_check
          %p364 = pneg %p149
        $region58: #{tpu_custom_call.1} parent=55 // pred_check_branch
          %366 = sbr.rel (%p364) target = $region60
        $region59: #{tpu_custom_call.1} parent=55 // pred_region
          %s367 = sand.u32 %s134, 1
          %s368 = scalar_lea.sflag [#allocation4], %s367
          %s369 = sand.u32 %s134, 1
          %s370 = smul.addr %s369, 32
          %s371 = scalar_lea.vmem [#allocation8], %s370
          %372 = dma.done %s368, 512
        $region60: #{tpu_custom_call.1} parent=55 // pred_fallthru
          _
      $region56: #{tpu_custom_call.1} parent=5 // pred_fallthru
        _
    $region6: #{tpu_custom_call.1} parent=1 // loop_footer
      %s22 = sadd.s32 1, %s18
    $region7: #{tpu_custom_call.1} parent=1 // loop_footer_branch
      %17 = sbr.rel target = $region3
    $region8: #{tpu_custom_call.1} parent=1 // loop_exit
      _
    %373 = vsyncpa [#allocation3], 1
    %s374 = scalar_lea.sflag [#allocation3], 1
    %375 = vsyncpa %s374, 1
    %376 = vsyncpa [#allocation6], 1
    %s377 = scalar_lea.sflag [#allocation6], 1
    %378 = vsyncpa %s377, 1
    %379 = vsyncpa [#allocation4], 1
    %s380 = scalar_lea.sflag [#allocation4], 1
    %381 = vsyncpa %s380, 1

</llo_original>
